<compile_context>
chip_gen: v7x
topology: tpu7x:2x2x1
jax: 0.10.0
libtpu: 0.0.40
codegen_flags: <defaults>
</compile_context>

<pallas_src>
import functools

import jax
import jax.numpy as jnp
from jax.experimental import pallas as pl
from jax.experimental.pallas import tpu as pltpu


def _round_up(a: int, b: int) -> int:
    return (a + b - 1) // b * b


def _vmem_capacity_bytes() -> int:
    """Physical VMEM of the local TPU; fall back to the most constrained gen (v7x, 64 MiB)."""
    try:
        return int(pltpu.get_tpu_info().vmem_capacity_bytes)
    except Exception:
        return 64 * 1024 * 1024


def _fused_mlp_kernel(*refs, num_layers: int, compute_dtype):
    """refs = (x_ref, w0, b0, w1, b1, ..., w_{L-1}, b_{L-1}, o_ref).

    x_ref: (tm, D) native dtype; w_i: (d_in, d_out) compute dtype (VMEM-resident);
    b_i: (1, d_out) f32; o_ref: (tm, H).
    """
    x_ref = refs[0]
    o_ref = refs[-1]
    wb_refs = refs[1:-1]

    h = x_ref[...].astype(compute_dtype)        # cast in VMEM, not in a wrapper XLA pass
    for li in range(num_layers):
        w_ref = wb_refs[2 * li]
        b_ref = wb_refs[2 * li + 1]
        acc = jnp.dot(h, w_ref[...], preferred_element_type=jnp.float32)
        acc = acc + b_ref[...]                  # (1, d_out) broadcast; f32 epilogue
        if li < num_layers - 1:
            # ReLU after every layer except the last; carry the activation in bf16 so the
            # (tm, H) intermediate does not spill as f32.
            h = jnp.maximum(acc, 0.0).astype(compute_dtype)
        else:
            h = acc
    o_ref[...] = h.astype(o_ref.dtype)


def fused_mlp_pallas(x, params, *, max_tm=1024, min_grid_steps=2,
                     compute_dtype=jnp.bfloat16, out_dtype=None,
                     weight_buffering=2):
    """Fused y = (relu(...relu(x@W0+b0)...))@W_{L-1}+b_{L-1} in one pallas_call.

    x: (M, D). params: [(w_i (d_in, d_out), b_i (d_out,)), ...]. Weights/biases stay
    VMEM-resident across the row grid; intermediates never touch HBM.
    """
    M, D = x.shape
    num_layers = len(params)
    H = params[-1][0].shape[1]
    out_dtype = out_dtype if out_dtype is not None else x.dtype

    cbytes = jnp.dtype(compute_dtype).itemsize
    x_bytes = jnp.dtype(x.dtype).itemsize
    o_bytes = jnp.dtype(out_dtype).itemsize
    max_dout = max(w.shape[1] for w, _ in params)

    # ---- Generation-aware VMEM budget ------------------------------------------------
    # Weights/biases are full-array blocks with a constant index_map; with default
    # pipelining they are still DOUBLE-buffered. weight_buffering=1 single-buffers them
    # (recommended on v7x / large H).
    wb_factor = 1 if weight_buffering == 1 else 2
    resident_bytes = wb_factor * sum(
        w.shape[0] * w.shape[1] * cbytes + 4 * w.shape[1] for w, _ in params)
    usable_vmem = _vmem_capacity_bytes() * 3 // 4      # headroom for compiler scratch

    def _tile_bytes(tm):
        return (2 * tm * D * x_bytes             # double-buffered input tile (native dtype)
                + 2 * tm * H * o_bytes           # double-buffered output tile
                + tm * max_dout * (4 + cbytes))  # f32 intermediate + bf16 copy

    # ---- Row-tile selection ------------------------------------------------------------
    # At least `min_grid_steps` grid steps (so v7x megacore shards rows and the pipeline
    # overlaps DMA with compute), sublane-aligned, shrunk until everything fits VMEM.
    tm = min(max_tm, max(16, _round_up(pl.cdiv(M, min_grid_steps), 16)))
    while tm > 16 and resident_bytes + _tile_bytes(tm) > usable_vmem:
        tm = max(16, _round_up(tm // 2, 16))
    assert resident_bytes + _tile_bytes(tm) <= usable_vmem, (
        "MLP weights do not fit in VMEM for the fused kernel")
    # TODO(synk): the module's default hidden_dim=8192 gives ~128 MiB per (H, H) weight in
    # bf16, so full fusion is impossible there; that regime needs per-layer K/N-tiled
    # matmul kernels (and fp8 weights on v7x) instead of this weights-resident kernel.

    grid = (pl.cdiv(M, tm),)     # partial last tile handled by Pallas masking (no padding)

    weight_spec_kwargs = {}
    if weight_buffering == 1:
        weight_spec_kwargs = dict(pipeline_mode=pl.Buffered(1))

    flat_inputs = [x]            # x fed in its native dtype; cast happens inside the kernel
    in_specs = [pl.BlockSpec((tm, D), lambda i: (i, 0))]
    for w, b in params:
        d_in, d_out = w.shape
        flat_inputs.append(w if w.dtype == compute_dtype else w.astype(compute_dtype))
        in_specs.append(pl.BlockSpec((d_in, d_out), lambda i: (0, 0), **weight_spec_kwargs))
        flat_inputs.append(b.reshape(1, d_out).astype(jnp.float32))
        in_specs.append(pl.BlockSpec((1, d_out), lambda i: (0, 0), **weight_spec_kwargs))

    flops = 2 * M * sum(w.shape[0] * w.shape[1] for w, _ in params)
    bytes_accessed = int(M * D * x_bytes
                         + resident_bytes // wb_factor
                         + M * H * o_bytes)

    kernel = functools.partial(_fused_mlp_kernel, num_layers=num_layers,
                               compute_dtype=compute_dtype)
    return pl.pallas_call(
        kernel,
        out_shape=jax.ShapeDtypeStruct((M, H), out_dtype),
        grid_spec=pltpu.PrefetchScalarGridSpec(
            num_scalar_prefetch=0,
            grid=grid,
            in_specs=in_specs,
            out_specs=pl.BlockSpec((tm, H), lambda i: (i, 0)),
        ),
        compiler_params=pltpu.CompilerParams(
            dimension_semantics=("parallel",),   # shard row tiles across TCs on v7x
            vmem_limit_bytes=int(usable_vmem),
        ),
        cost_estimate=pl.CostEstimate(
            flops=flops, transcendentals=0, bytes_accessed=bytes_accessed),
    )(*flat_inputs)


def mlp_head_forward(x, params, *, max_tm=1024, compute_dtype=jnp.bfloat16,
                     out_dtype=None):
    """x: (N, S, D) -> (N, S, hidden_dim). The whole MLP runs in one Pallas kernel."""
    N, S, D = x.shape
    h = x.reshape(N * S, D)
    y = fused_mlp_pallas(h, params, max_tm=max_tm, compute_dtype=compute_dtype,
                         out_dtype=out_dtype)
    return y.reshape(N, S, -1)


def init_mlp_head_params(key, in_dim, hidden_dim, num_layers):
    """Deterministic init mimicking torch.nn.Linear's uniform(-1/sqrt(fan_in), ...).
    Weights stored as (in, out) = transpose of PyTorch's (out, in)."""
    params = []
    dims_in = [in_dim] + [hidden_dim] * (num_layers - 1)
    for d_in in dims_in:
        key, kw, kb = jax.random.split(key, 3)
        bound = 1.0 / jnp.sqrt(jnp.float32(d_in))
        w = jax.random.uniform(kw, (d_in, hidden_dim), jnp.float32, -bound, bound)
        b = jax.random.uniform(kb, (hidden_dim,), jnp.float32, -bound, bound)
        params.append((w, b))
    return params


def prepare_mlp_head_params(params, compute_dtype=jnp.bfloat16):
    """One-time cast of weights to the kernel compute dtype (biases stay f32)."""
    return [(w.astype(compute_dtype), b.astype(jnp.float32)) for w, b in params]


if __name__ == "__main__":
    # Small shapes consistent with the module's (N, S, D) forward. Feature dims are
    # multiples of 256 so MXU passes are full on v6e/v7x and the store is lane-dense.
    N, S, in_dim, hidden_dim, num_layers = 2, 64, 256, 256, 3

    key = jax.random.PRNGKey(0)
    k_x, k_p = jax.random.split(key)
    x = jax.random.normal(k_x, (N, S, in_dim), jnp.float32)
    params_f32 = init_mlp_head_params(k_p, in_dim, hidden_dim, num_layers)
    params = prepare_mlp_head_params(params_f32)   # one-time bf16 weight cast (not per call)

    fwd = jax.jit(mlp_head_forward)
    out = jax.block_until_ready(fwd(x, params))
    assert out.shape == (N, S, hidden_dim), out.shape
    assert out.dtype == x.dtype

    # Reference: plain-JAX f32 MLP (same math as the PyTorch module). The kernel uses
    # bf16 operands with f32 accumulation, so compare with a modest tolerance.
    h = x.reshape(N * S, in_dim)
    for li, (w, b) in enumerate(params_f32):
        h = h @ w + b
        if li < num_layers - 1:
            h = jnp.maximum(h, 0.0)
    ref = h.reshape(N, S, hidden_dim)
    assert jnp.allclose(out, ref, atol=3e-2, rtol=3e-2), (
        float(jnp.max(jnp.abs(out - ref))))

    # bf16-output path (halves the HBM writeback — the largest per-tile HBM term) for
    # consumers that tolerate bf16 activations.
    fwd_bf16 = jax.jit(functools.partial(mlp_head_forward, out_dtype=jnp.bfloat16))
    out_bf16 = jax.block_until_ready(fwd_bf16(x, params))
    assert out_bf16.dtype == jnp.bfloat16
    assert jnp.allclose(out_bf16.astype(jnp.float32), ref, atol=5e-2, rtol=5e-2), (
        float(jnp.max(jnp.abs(out_bf16.astype(jnp.float32) - ref))))

    print("KERNEL_OK")
</pallas_src>

<mosaic_0001>
module attributes {stable_mosaic.version = 11 : i64} {
  func.func @_fused_mlp_kernel(%arg0: i32, %arg1: memref<64x256xf32, #tpu.memory_space<vmem>>, %arg2: memref<256x256xbf16, #tpu.memory_space<vmem>>, %arg3: memref<1x256xf32, #tpu.memory_space<vmem>>, %arg4: memref<256x256xbf16, #tpu.memory_space<vmem>>, %arg5: memref<1x256xf32, #tpu.memory_space<vmem>>, %arg6: memref<256x256xbf16, #tpu.memory_space<vmem>>, %arg7: memref<1x256xf32, #tpu.memory_space<vmem>>, %arg8: memref<64x256xf32, #tpu.memory_space<vmem>>) attributes {dimension_semantics = [#tpu.dimension_semantics<parallel>], iteration_bounds = array<i64: 2>, scalar_prefetch = 0 : i64, scratch_operands = 0 : i64, tpu.core_type = #tpu.core_type<tc>, window_params = [{transform_indices = @transform_0, window_bounds = array<i64: 64, 256>}, {pipeline_mode = #tpu.pipeline_mode<synchronous>, transform_indices = @transform_1, window_bounds = array<i64: 256, 256>}, {pipeline_mode = #tpu.pipeline_mode<synchronous>, transform_indices = @transform_2, window_bounds = array<i64: 1, 256>}, {pipeline_mode = #tpu.pipeline_mode<synchronous>, transform_indices = @transform_3, window_bounds = array<i64: 256, 256>}, {pipeline_mode = #tpu.pipeline_mode<synchronous>, transform_indices = @transform_4, window_bounds = array<i64: 1, 256>}, {pipeline_mode = #tpu.pipeline_mode<synchronous>, transform_indices = @transform_5, window_bounds = array<i64: 256, 256>}, {pipeline_mode = #tpu.pipeline_mode<synchronous>, transform_indices = @transform_6, window_bounds = array<i64: 1, 256>}, {transform_indices = @transform_7, window_bounds = array<i64: 64, 256>}]} {
    %c0 = arith.constant 0 : index
    %c0_0 = arith.constant 0 : index
    %0 = vector.load %arg1[%c0, %c0_0] : memref<64x256xf32, #tpu.memory_space<vmem>>, vector<64x256xf32>
    %1 = arith.truncf %0 : vector<64x256xf32> to vector<64x256xbf16>
    %c0_1 = arith.constant 0 : index
    %c0_2 = arith.constant 0 : index
    %2 = vector.load %arg2[%c0_1, %c0_2] : memref<256x256xbf16, #tpu.memory_space<vmem>>, vector<256x256xbf16>
    %cst = arith.constant dense<0.000000e+00> : vector<64x256xf32>
    %3 = tpu.matmul %1, %2, %cst {dimension_numbers = #tpu.dot_dimension_numbers<[1], [0], [0], [1], [0, 0, 1, 1], [], []>} : vector<64x256xbf16>, vector<256x256xbf16>, vector<64x256xf32> -> vector<64x256xf32>
    %c0_3 = arith.constant 0 : index
    %c0_4 = arith.constant 0 : index
    %4 = vector.load %arg3[%c0_3, %c0_4] : memref<1x256xf32, #tpu.memory_space<vmem>>, vector<1x256xf32>
    %5 = vector.broadcast %4 : vector<1x256xf32> to vector<64x256xf32>
    %6 = arith.addf %3, %5 : vector<64x256xf32>
    %cst_5 = arith.constant 0.000000e+00 : f32
    %7 = vector.broadcast %cst_5 : f32 to vector<64x256xf32>
    %8 = arith.maximumf %6, %7 : vector<64x256xf32>
    %9 = arith.truncf %8 : vector<64x256xf32> to vector<64x256xbf16>
    %c0_6 = arith.constant 0 : index
    %c0_7 = arith.constant 0 : index
    %10 = vector.load %arg4[%c0_6, %c0_7] : memref<256x256xbf16, #tpu.memory_space<vmem>>, vector<256x256xbf16>
    %cst_8 = arith.constant dense<0.000000e+00> : vector<64x256xf32>
    %11 = tpu.matmul %9, %10, %cst_8 {dimension_numbers = #tpu.dot_dimension_numbers<[1], [0], [0], [1], [0, 0, 1, 1], [], []>} : vector<64x256xbf16>, vector<256x256xbf16>, vector<64x256xf32> -> vector<64x256xf32>
    %c0_9 = arith.constant 0 : index
    %c0_10 = arith.constant 0 : index
    %12 = vector.load %arg5[%c0_9, %c0_10] : memref<1x256xf32, #tpu.memory_space<vmem>>, vector<1x256xf32>
    %13 = vector.broadcast %12 : vector<1x256xf32> to vector<64x256xf32>
    %14 = arith.addf %11, %13 : vector<64x256xf32>
    %cst_11 = arith.constant 0.000000e+00 : f32
    %15 = vector.broadcast %cst_11 : f32 to vector<64x256xf32>
    %16 = arith.maximumf %14, %15 : vector<64x256xf32>
    %17 = arith.truncf %16 : vector<64x256xf32> to vector<64x256xbf16>
    %c0_12 = arith.constant 0 : index
    %c0_13 = arith.constant 0 : index
    %18 = vector.load %arg6[%c0_12, %c0_13] : memref<256x256xbf16, #tpu.memory_space<vmem>>, vector<256x256xbf16>
    %cst_14 = arith.constant dense<0.000000e+00> : vector<64x256xf32>
    %19 = tpu.matmul %17, %18, %cst_14 {dimension_numbers = #tpu.dot_dimension_numbers<[1], [0], [0], [1], [0, 0, 1, 1], [], []>} : vector<64x256xbf16>, vector<256x256xbf16>, vector<64x256xf32> -> vector<64x256xf32>
    %c0_15 = arith.constant 0 : index
    %c0_16 = arith.constant 0 : index
    %20 = vector.load %arg7[%c0_15, %c0_16] : memref<1x256xf32, #tpu.memory_space<vmem>>, vector<1x256xf32>
    %21 = vector.broadcast %20 : vector<1x256xf32> to vector<64x256xf32>
    %22 = arith.addf %19, %21 : vector<64x256xf32>
    %c0_17 = arith.constant 0 : index
    %c0_18 = arith.constant 0 : index
    %23 = vector.load %arg8[%c0_17, %c0_18] : memref<64x256xf32, #tpu.memory_space<vmem>>, vector<64x256xf32>
    tpu.vector_store %arg8[%c0_17, %c0_18], %22 {strides = array<i32>} : memref<64x256xf32, #tpu.memory_space<vmem>>, vector<64x256xf32>,
    return
  }
  func.func @transform_0(%arg0: i32) -> (i32, i32) {
    %c0_i32 = arith.constant 0 : i32
    %c0_i32_0 = arith.constant 0 : i32
    return %arg0, %c0_i32 : i32, i32
  }
  func.func @transform_1(%arg0: i32) -> (i32, i32) {
    %c0_i32 = arith.constant 0 : i32
    %c0_i32_0 = arith.constant 0 : i32
    %c0_i32_1 = arith.constant 0 : i32
    return %c0_i32, %c0_i32_0 : i32, i32
  }
  func.func @transform_2(%arg0: i32) -> (i32, i32) {
    %c0_i32 = arith.constant 0 : i32
    %c0_i32_0 = arith.constant 0 : i32
    %c0_i32_1 = arith.constant 0 : i32
    return %c0_i32, %c0_i32_0 : i32, i32
  }
  func.func @transform_3(%arg0: i32) -> (i32, i32) {
    %c0_i32 = arith.constant 0 : i32
    %c0_i32_0 = arith.constant 0 : i32
    %c0_i32_1 = arith.constant 0 : i32
    return %c0_i32, %c0_i32_0 : i32, i32
  }
  func.func @transform_4(%arg0: i32) -> (i32, i32) {
    %c0_i32 = arith.constant 0 : i32
    %c0_i32_0 = arith.constant 0 : i32
    %c0_i32_1 = arith.constant 0 : i32
    return %c0_i32, %c0_i32_0 : i32, i32
  }
  func.func @transform_5(%arg0: i32) -> (i32, i32) {
    %c0_i32 = arith.constant 0 : i32
    %c0_i32_0 = arith.constant 0 : i32
    %c0_i32_1 = arith.constant 0 : i32
    return %c0_i32, %c0_i32_0 : i32, i32
  }
  func.func @transform_6(%arg0: i32) -> (i32, i32) {
    %c0_i32 = arith.constant 0 : i32
    %c0_i32_0 = arith.constant 0 : i32
    %c0_i32_1 = arith.constant 0 : i32
    return %c0_i32, %c0_i32_0 : i32, i32
  }
  func.func @transform_7(%arg0: i32) -> (i32, i32) {
    %c0_i32 = arith.constant 0 : i32
    %c0_i32_0 = arith.constant 0 : i32
    return %arg0, %c0_i32 : i32, i32
  }
}

</mosaic_0001>

<llo_original>
// kernel: mlp_head_forward.1
$region0: #{mlp_head_forward.1}
  #allocation0 [shape = 'u32[]', space=smem, size = 0x4, offset = 0x4, fixed_abs, tag = 'smem constant byte address 0x4 - core index']
  #allocation1 [shape = 'u32[144,128]{1,0:T(1,128)}', space=vmem, size = 0x12000, scoped, tag = 'internal scratch']
  %s0 = inlined_call_operand.hbm [shape: f32[128,256], index: 0, kind: input, shape index: {}]
  %s1 = inlined_call_operand.hbm [shape: bf16[256,256], index: 1, kind: input, shape index: {}]
  %s2 = inlined_call_operand.vmem [shape: f32[1,256], index: 2, kind: input, shape index: {}]
  %s3 = inlined_call_operand.hbm [shape: bf16[256,256], index: 3, kind: input, shape index: {}]
  %s4 = inlined_call_operand.vmem [shape: f32[1,256], index: 4, kind: input, shape index: {}]
  %s5 = inlined_call_operand.hbm [shape: bf16[256,256], index: 5, kind: input, shape index: {}]
  %s6 = inlined_call_operand.vmem [shape: f32[1,256], index: 6, kind: input, shape index: {}]
  %s7 = inlined_call_operand.hbm [shape: f32[128,256], index: 7, kind: output, shape index: {}]
  %s8 = sld [smem:[#allocation0]]
  $region77: #{mlp_head_forward.1} parent=0
    _
  %s10 = ssub.s32 1, %s8
  %s11 = scalar_select 0, %s10, %s8
  $region1: #{mlp_head_forward.1} parent=0
    #allocation2 [shape = 'u8[131072]{0}', space=vmem, size = 0x20000, scoped, tag = 'input window, operand 0']
    #allocation3 [shape = 's32[2]{0}', space=sflag, size = 0x8, scoped, tag = 'scoped memory for mlp_head_forward.1']
    #allocation4 [shape = 's32[2]{0}', space=sflag, size = 0x8, scoped, tag = 'scoped memory for mlp_head_forward.1']
    #allocation5 [shape = 'u8[131072]{0}', space=vmem, size = 0x20000, scoped, tag = 'input window, operand 1, single buffered']
    #allocation6 [shape = 's32[1]{0}', space=sflag, size = 0x4, scoped, tag = 'scoped memory for mlp_head_forward.1']
    #allocation7 [shape = 'u8[131072]{0}', space=vmem, size = 0x20000, scoped, tag = 'input window, operand 3, single buffered']
    #allocation8 [shape = 'u8[131072]{0}', space=vmem, size = 0x20000, scoped, tag = 'input window, operand 5, single buffered']
    #allocation9 [shape = 's32[1]{0}', space=sflag, size = 0x4, scoped, tag = 'scoped memory for mlp_head_forward.1']
    #allocation10 [shape = 'u8[131072]{0}', space=vmem, size = 0x20000, scoped, tag = 'output window, operand 0']
    %12 = vsyncpa [#allocation3], 0
    %s13 = scalar_lea.sflag [#allocation3], 1
    %14 = vsyncpa %s13, 0
    %15 = vsyncpa [#allocation6], 0
    %16 = vsyncpa [#allocation9], 0
    %17 = vsyncpa [#allocation4], 0
    %s18 = scalar_lea.sflag [#allocation4], 1
    %19 = vsyncpa %s18, 0
    loop: start=0, step=1, limit=4
    $region2: #{mlp_head_forward.1} parent=1 // loop_pre_header
      _
    $region3: #{mlp_head_forward.1} parent=1 // loop_header
      %s21 = sphi 0, %s25
      %p22 = scmp.ge.s32.totalorder %s21, 4
      %s31 = sphi 0, %s33
      %s34 = sphi 0, %s31
      %s35 = sphi 0, %s34
      %s51 = sphi 0, %s35
      %s55 = sphi 0, %s55
      %s57 = sphi 0, %s55
      %s58 = sphi 0, %s57
      %s72 = sphi 0, %s58
      %s76 = sphi 0, %s76
      %s78 = sphi 0, %s76
      %s79 = sphi 0, %s78
      %s93 = sphi 0, %s79
      %s97 = sphi 0, %s97
      %s99 = sphi 0, %s97
      %s100 = sphi 0, %s99
      %s114 = sphi 0, %s100
      %s118 = sphi 0, %s118
      %s120 = sphi 0, %s118
      %s121 = sphi 0, %s120
      %s135 = sphi 0, %s121
      %s139 = sphi 0, %s139
      %s141 = sphi 0, %s139
      %s142 = sphi 0, %s141
      %s156 = sphi 0, %s142
      %s160 = sphi 0, %s160
      %s162 = sphi 0, %s160
      %s163 = sphi 0, %s162
      %s177 = sphi 0, %s163
      %s183 = sphi 0, %s185
      %s186 = sphi 0, %s183
      %s187 = sphi 0, %s186
      %s203 = sphi 0, %s187
    $region4: #{mlp_head_forward.1} parent=1 // loop_header_branch
      %24 = sbr.rel (%p22) target = $region8
    $region5: #{mlp_head_forward.1} parent=1 // loop_body
      %s26 = ssub.s32 %s21, 1
      %s27 = ssub.s32 %s21, 2
      %s28 = sadd.s32 %s21, 1
      %s29 = ssub.s32 %s21, %s28
      %p30 = scmp.eq.s32.totalorder %s29, 0
      %s32 = sadd.s32 %s31, 1
      %s33 = scalar_select %p30, %s31, %s32
      %p36 = pneg %p30
      %p37 = scmp.eq.s32.totalorder %s21, 1
      %p38 = por %p36, %p37
      %p39 = scmp.ne.s32.totalorder %s31, %s34
      %p40 = scmp.eq.s32.totalorder %s21, 0
      %p41 = por %p39, %p40
      %p42 = scmp.ne.s32.totalorder %s31, %s34
      %p43 = scmp.eq.s32.totalorder %s26, 1
      %p44 = por %p42, %p43
      %p45 = scmp.ne.s32.totalorder %s34, %s35
      %p46 = scmp.eq.s32.totalorder %s26, 0
      %p47 = por %p45, %p46
      %p48 = scmp.ne.s32.totalorder %s34, %s35
      %p49 = scmp.eq.s32.totalorder %s27, 1
      %p50 = por %p48, %p49
      %p52 = scmp.ne.s32.totalorder %s35, %s51
      %p53 = scmp.eq.s32.totalorder %s27, 0
      %p54 = por %p52, %p53
      %s56 = sadd.s32 %s55, 1
      %p59 = scmp.eq.s32.totalorder %s21, 1
      %p60 = scmp.ne.s32.totalorder %s55, %s57
      %p61 = scmp.eq.s32.totalorder %s21, 0
      %p62 = por %p60, %p61
      %p63 = scmp.ne.s32.totalorder %s55, %s57
      %p64 = scmp.eq.s32.totalorder %s26, 1
      %p65 = por %p63, %p64
      %p66 = scmp.ne.s32.totalorder %s57, %s58
      %p67 = scmp.eq.s32.totalorder %s26, 0
      %p68 = por %p66, %p67
      %p69 = scmp.ne.s32.totalorder %s57, %s58
      %p70 = scmp.eq.s32.totalorder %s27, 1
      %p71 = por %p69, %p70
      %p73 = scmp.ne.s32.totalorder %s58, %s72
      %p74 = scmp.eq.s32.totalorder %s27, 0
      %p75 = por %p73, %p74
      %s77 = sadd.s32 %s76, 1
      %p80 = scmp.eq.s32.totalorder %s21, 1
      %p81 = scmp.ne.s32.totalorder %s76, %s78
      %p82 = scmp.eq.s32.totalorder %s21, 0
      %p83 = por %p81, %p82
      %p84 = scmp.ne.s32.totalorder %s76, %s78
      %p85 = scmp.eq.s32.totalorder %s26, 1
      %p86 = por %p84, %p85
      %p87 = scmp.ne.s32.totalorder %s78, %s79
      %p88 = scmp.eq.s32.totalorder %s26, 0
      %p89 = por %p87, %p88
      %p90 = scmp.ne.s32.totalorder %s78, %s79
      %p91 = scmp.eq.s32.totalorder %s27, 1
      %p92 = por %p90, %p91
      %p94 = scmp.ne.s32.totalorder %s79, %s93
      %p95 = scmp.eq.s32.totalorder %s27, 0
      %p96 = por %p94, %p95
      %s98 = sadd.s32 %s97, 1
      %p101 = scmp.eq.s32.totalorder %s21, 1
      %p102 = scmp.ne.s32.totalorder %s97, %s99
      %p103 = scmp.eq.s32.totalorder %s21, 0
      %p104 = por %p102, %p103
      %p105 = scmp.ne.s32.totalorder %s97, %s99
      %p106 = scmp.eq.s32.totalorder %s26, 1
      %p107 = por %p105, %p106
      %p108 = scmp.ne.s32.totalorder %s99, %s100
      %p109 = scmp.eq.s32.totalorder %s26, 0
      %p110 = por %p108, %p109
      %p111 = scmp.ne.s32.totalorder %s99, %s100
      %p112 = scmp.eq.s32.totalorder %s27, 1
      %p113 = por %p111, %p112
      %p115 = scmp.ne.s32.totalorder %s100, %s114
      %p116 = scmp.eq.s32.totalorder %s27, 0
      %p117 = por %p115, %p116
      %s119 = sadd.s32 %s118, 1
      %p122 = scmp.eq.s32.totalorder %s21, 1
      %p123 = scmp.ne.s32.totalorder %s118, %s120
      %p124 = scmp.eq.s32.totalorder %s21, 0
      %p125 = por %p123, %p124
      %p126 = scmp.ne.s32.totalorder %s118, %s120
      %p127 = scmp.eq.s32.totalorder %s26, 1
      %p128 = por %p126, %p127
      %p129 = scmp.ne.s32.totalorder %s120, %s121
      %p130 = scmp.eq.s32.totalorder %s26, 0
      %p131 = por %p129, %p130
      %p132 = scmp.ne.s32.totalorder %s120, %s121
      %p133 = scmp.eq.s32.totalorder %s27, 1
      %p134 = por %p132, %p133
      %p136 = scmp.ne.s32.totalorder %s121, %s135
      %p137 = scmp.eq.s32.totalorder %s27, 0
      %p138 = por %p136, %p137
      %s140 = sadd.s32 %s139, 1
      %p143 = scmp.eq.s32.totalorder %s21, 1
      %p144 = scmp.ne.s32.totalorder %s139, %s141
      %p145 = scmp.eq.s32.totalorder %s21, 0
      %p146 = por %p144, %p145
      %p147 = scmp.ne.s32.totalorder %s139, %s141
      %p148 = scmp.eq.s32.totalorder %s26, 1
      %p149 = por %p147, %p148
      %p150 = scmp.ne.s32.totalorder %s141, %s142
      %p151 = scmp.eq.s32.totalorder %s26, 0
      %p152 = por %p150, %p151
      %p153 = scmp.ne.s32.totalorder %s141, %s142
      %p154 = scmp.eq.s32.totalorder %s27, 1
      %p155 = por %p153, %p154
      %p157 = scmp.ne.s32.totalorder %s142, %s156
      %p158 = scmp.eq.s32.totalorder %s27, 0
      %p159 = por %p157, %p158
      %s161 = sadd.s32 %s160, 1
      %p164 = scmp.eq.s32.totalorder %s21, 1
      %p165 = scmp.ne.s32.totalorder %s160, %s162
      %p166 = scmp.eq.s32.totalorder %s21, 0
      %p167 = por %p165, %p166
      %p168 = scmp.ne.s32.totalorder %s160, %s162
      %p169 = scmp.eq.s32.totalorder %s26, 1
      %p170 = por %p168, %p169
      %p171 = scmp.ne.s32.totalorder %s162, %s163
      %p172 = scmp.eq.s32.totalorder %s26, 0
      %p173 = por %p171, %p172
      %p174 = scmp.ne.s32.totalorder %s162, %s163
      %p175 = scmp.eq.s32.totalorder %s27, 1
      %p176 = por %p174, %p175
      %p178 = scmp.ne.s32.totalorder %s163, %s177
      %p179 = scmp.eq.s32.totalorder %s27, 0
      %p180 = por %p178, %p179
      %s181 = ssub.s32 %s21, %s28
      %p182 = scmp.eq.s32.totalorder %s181, 0
      %s184 = sadd.s32 %s183, 1
      %s185 = scalar_select %p182, %s183, %s184
      %p188 = pneg %p182
      %p189 = scmp.eq.s32.totalorder %s21, 1
      %p190 = por %p188, %p189
      %p191 = scmp.ne.s32.totalorder %s183, %s186
      %p192 = scmp.eq.s32.totalorder %s21, 0
      %p193 = por %p191, %p192
      %p194 = scmp.ne.s32.totalorder %s183, %s186
      %p195 = scmp.eq.s32.totalorder %s26, 1
      %p196 = por %p194, %p195
      %p197 = scmp.ne.s32.totalorder %s186, %s187
      %p198 = scmp.eq.s32.totalorder %s26, 0
      %p199 = por %p197, %p198
      %p200 = scmp.ne.s32.totalorder %s186, %s187
      %p201 = scmp.eq.s32.totalorder %s27, 1
      %p202 = por %p200, %p201
      %p204 = scmp.ne.s32.totalorder %s187, %s203
      %p205 = scmp.eq.s32.totalorder %s27, 0
      %p206 = por %p204, %p205
      %p207 = scmp.le.s32.totalorder 1, %s21
      %p208 = scmp.lt.s32.totalorder %s21, 3
      %p209 = pnand %p207, %p208
      %p210 = pneg %p209
      // Predicated region
      $region9: #{mlp_head_forward.1} parent=5 // pred_check
        _
      $region10: #{mlp_head_forward.1} parent=5 // pred_check_branch
        %212 = sbr.rel (%p209) target = $region12
      $region11: #{mlp_head_forward.1} parent=5 // pred_region
        %s213 = ssub.s32 %s21, 1
        // Predicated region
        $region13: #{mlp_head_forward.1} parent=11 // pred_check
          %p214 = pneg %p68
        $region14: #{mlp_head_forward.1} parent=11 // pred_check_branch
          %216 = sbr.rel (%p214) target = $region16
        $region15: #{mlp_head_forward.1} parent=11 // pred_region
          %s218 = ssub.s32 4096, 4096
          %219 = vsyncadd [#allocation6], %s218
          %s220 = sshll.u32 [#allocation5], 4
          %s221 = int_to_ptr.vmem [resolvable:$true] %s220
          %226 = dma.hbm_to_vmem [thread:$0]  %s1, 4096, %s221, [#allocation6], 128, 128, 8
        $region16: #{mlp_head_forward.1} parent=11 // pred_fallthru
          _
        // Predicated region
        $region17: #{mlp_head_forward.1} parent=11 // pred_check
          %p227 = pneg %p89
        $region18: #{mlp_head_forward.1} parent=11 // pred_check_branch
          %229 = sbr.rel (%p227) target = $region20
        $region19: #{mlp_head_forward.1} parent=11 // pred_region
          _
        $region20: #{mlp_head_forward.1} parent=11 // pred_fallthru
          _
        // Predicated region
        $region21: #{mlp_head_forward.1} parent=11 // pred_check
          %p230 = pneg %p110
        $region22: #{mlp_head_forward.1} parent=11 // pred_check_branch
          %232 = sbr.rel (%p230) target = $region24
        $region23: #{mlp_head_forward.1} parent=11 // pred_region
          %s234 = ssub.s32 4096, 4096
          %235 = vsyncadd [#allocation6], %s234
          %s236 = sshll.u32 [#allocation7], 4
          %s237 = int_to_ptr.vmem [resolvable:$true] %s236
          %242 = dma.hbm_to_vmem [thread:$0]  %s3, 4096, %s237, [#allocation6], 128, 128, 8
        $region24: #{mlp_head_forward.1} parent=11 // pred_fallthru
          _
        // Predicated region
        $region25: #{mlp_head_forward.1} parent=11 // pred_check
          %p243 = pneg %p131
        $region26: #{mlp_head_forward.1} parent=11 // pred_check_branch
          %245 = sbr.rel (%p243) target = $region28
        $region27: #{mlp_head_forward.1} parent=11 // pred_region
          _
        $region28: #{mlp_head_forward.1} parent=11 // pred_fallthru
          _
        // Predicated region
        $region29: #{mlp_head_forward.1} parent=11 // pred_check
          %p246 = pneg %p152
        $region30: #{mlp_head_forward.1} parent=11 // pred_check_branch
          %248 = sbr.rel (%p246) target = $region32
        $region31: #{mlp_head_forward.1} parent=11 // pred_region
          %s250 = ssub.s32 4096, 4096
          %251 = vsyncadd [#allocation9], %s250
          %s252 = sshll.u32 [#allocation8], 4
          %s253 = int_to_ptr.vmem [resolvable:$true] %s252
          %258 = dma.hbm_to_vmem [thread:$0]  %s5, 4096, %s253, [#allocation9], 128, 128, 8
        $region32: #{mlp_head_forward.1} parent=11 // pred_fallthru
          _
        // Predicated region
        $region33: #{mlp_head_forward.1} parent=11 // pred_check
          %p259 = pneg %p173
        $region34: #{mlp_head_forward.1} parent=11 // pred_check_branch
          %261 = sbr.rel (%p259) target = $region36
        $region35: #{mlp_head_forward.1} parent=11 // pred_region
          _
        $region36: #{mlp_head_forward.1} parent=11 // pred_fallthru
          _
      $region12: #{mlp_head_forward.1} parent=5 // pred_fallthru
        _
      %p262 = scmp.lt.s32.totalorder %s21, 2
      // Predicated region
      $region37: #{mlp_head_forward.1} parent=5 // pred_check
        %p263 = pneg %p262
      $region38: #{mlp_head_forward.1} parent=5 // pred_check_branch
        %265 = sbr.rel (%p263) target = $region40
      $region39: #{mlp_head_forward.1} parent=5 // pred_region
        // Predicated region
        $region41: #{mlp_head_forward.1} parent=39 // pred_check
          %p266 = pneg %p41
        $region42: #{mlp_head_forward.1} parent=39 // pred_check_branch
          %268 = sbr.rel (%p266) target = $region44
        $region43: #{mlp_head_forward.1} parent=39 // pred_region
          %s269 = sand.u32 %s31, 1
          %s270 = scalar_lea.sflag [#allocation3], %s269
          %s271 = sand.u32 %s31, 1
          %s272 = smul.addr %s271, 128
          %s273 = scalar_lea.vmem [#allocation2], %s272
          %s274 = smul.u32 8, %s21
          %s276 = ssub.s32 2048, 2048
          %277 = vsyncadd %s270, %s276
          %s278 = smul.addr %s274, 2
          %s279 = smul.addr %s278, 128
          %s280 = scalar_lea.hbm %s0, %s279
          %s281 = sshll.u32 %s273, 4
          %s282 = int_to_ptr.vmem [resolvable:$true] %s281
          %287 = dma.hbm_to_vmem [thread:$0]  %s280, 2048, %s282, %s270, 256, 256, 16
        $region44: #{mlp_head_forward.1} parent=39 // pred_fallthru
          _
      $region40: #{mlp_head_forward.1} parent=5 // pred_fallthru
        _
      %p288 = scmp.le.s32.totalorder 1, %s21
      %p289 = scmp.lt.s32.totalorder %s21, 3
      %p290 = pnand %p288, %p289
      %p291 = pneg %p290
      // Predicated region
      $region45: #{mlp_head_forward.1} parent=5 // pred_check
        _
      $region46: #{mlp_head_forward.1} parent=5 // pred_check_branch
        %293 = sbr.rel (%p290) target = $region48
      $region47: #{mlp_head_forward.1} parent=5 // pred_region
        %s294 = ssub.s32 %s21, 1
        %s295 = sand.u32 %s34, 1
        %s296 = scalar_lea.sflag [#allocation3], %s295
        %s297 = sand.u32 %s34, 1
        %s298 = smul.addr %s297, 128
        %s299 = scalar_lea.vmem [#allocation2], %s298
        // Predicated region
        $region49: #{mlp_head_forward.1} parent=47 // pred_check
          %p300 = pneg %p47
        $region50: #{mlp_head_forward.1} parent=47 // pred_check_branch
          %302 = sbr.rel (%p300) target = $region52
        $region51: #{mlp_head_forward.1} parent=47 // pred_region
          %303 = dma.done %s296, 2048
        $region52: #{mlp_head_forward.1} parent=47 // pred_fallthru
          _
        // Predicated region
        $region53: #{mlp_head_forward.1} parent=47 // pred_check
          %p304 = pneg %p68
        $region54: #{mlp_head_forward.1} parent=47 // pred_check_branch
          %306 = sbr.rel (%p304) target = $region56
        $region55: #{mlp_head_forward.1} parent=47 // pred_region
          %307 = dma.done [#allocation6], 4096
        $region56: #{mlp_head_forward.1} parent=47 // pred_fallthru
          _
        // Predicated region
        $region57: #{mlp_head_forward.1} parent=47 // pred_check
          %p308 = pneg %p110
        $region58: #{mlp_head_forward.1} parent=47 // pred_check_branch
          %310 = sbr.rel (%p308) target = $region60
        $region59: #{mlp_head_forward.1} parent=47 // pred_region
          %311 = dma.done [#allocation6], 4096
        $region60: #{mlp_head_forward.1} parent=47 // pred_fallthru
          _
        // Predicated region
        $region61: #{mlp_head_forward.1} parent=47 // pred_check
          %p312 = pneg %p152
        $region62: #{mlp_head_forward.1} parent=47 // pred_check_branch
          %314 = sbr.rel (%p312) target = $region64
        $region63: #{mlp_head_forward.1} parent=47 // pred_region
          %315 = dma.done [#allocation9], 4096
        $region64: #{mlp_head_forward.1} parent=47 // pred_fallthru
          _
        %s316 = sand.u32 %s34, 1
        %s317 = scalar_lea.sflag [#allocation3], %s316
        %s318 = sand.u32 %s34, 1
        %s319 = smul.addr %s318, 128
        %s320 = scalar_lea.vmem [#allocation2], %s319
        %p321 = pneg %p47
        %p322 = pneg %p44
        %p323 = pneg %p68
        %p324 = pneg %p65
        %p325 = pneg %p89
        %p326 = pneg %p86
        %p327 = pneg %p110
        %p328 = pneg %p107
        %p329 = pneg %p131
        %p330 = pneg %p128
        %p331 = pneg %p152
        %p332 = pneg %p149
        %p333 = pneg %p173
        %p334 = pneg %p170
        %p335 = pneg %p199
        %p336 = pneg %p196
        %s337 = sand.u32 %s186, 1
        %s338 = scalar_lea.sflag [#allocation4], %s337
        %s339 = sand.u32 %s186, 1
        %s340 = smul.addr %s339, 128
        %s341 = scalar_lea.vmem [#allocation10], %s340
        %s342 = smul.u32 8, %s26
        %s343 = smul.u32 8, %s26
        %v344 = vld [vmem:[%s299] sm:$0xff]
        %v345 = vld [vmem:[%s299 + $0x8] sm:$0xff]
        %v346 = vld [vmem:[%s299 + $0x10] sm:$0xff]
        %v347 = vld [vmem:[%s299 + $0x18] sm:$0xff]
        %v348 = vld [vmem:[%s299 + $0x20] sm:$0xff]
        %v349 = vld [vmem:[%s299 + $0x28] sm:$0xff]
        %v350 = vld [vmem:[%s299 + $0x30] sm:$0xff]
        %v351 = vld [vmem:[%s299 + $0x38] sm:$0xff]
        %v352 = vld [vmem:[%s299 + $0x40] sm:$0xff]
        %v353 = vld [vmem:[%s299 + $0x48] sm:$0xff]
        %v354 = vld [vmem:[%s299 + $0x50] sm:$0xff]
        %v355 = vld [vmem:[%s299 + $0x58] sm:$0xff]
        %v356 = vld [vmem:[%s299 + $0x60] sm:$0xff]
        %v357 = vld [vmem:[%s299 + $0x68] sm:$0xff]
        %v358 = vld [vmem:[%s299 + $0x70] sm:$0xff]
        %v359 = vld [vmem:[%s299 + $0x78] sm:$0xff]
        %v360 = vpack.c.bf16 %v346, %v344
        %v361 = vpack.c.bf16 %v347, %v345
        %v362 = vpack.c.bf16 %v350, %v348
        %v363 = vpack.c.bf16 %v351, %v349
        %v364 = vpack.c.bf16 %v354, %v352
        %v365 = vpack.c.bf16 %v355, %v353
        %v366 = vpack.c.bf16 %v358, %v356
        %v367 = vpack.c.bf16 %v359, %v357
        %v368 = vld [vmem:[#allocation5] sm:$0xff]
        %v369 = vld [vmem:[#allocation5 + $0x8] sm:$0xff]
        %v370 = vld [vmem:[#allocation5 + $0x10] sm:$0xff]
        %v371 = vld [vmem:[#allocation5 + $0x18] sm:$0xff]
        %v372 = vld [vmem:[#allocation5 + $0x20] sm:$0xff]
        %v373 = vld [vmem:[#allocation5 + $0x28] sm:$0xff]
        %v374 = vld [vmem:[#allocation5 + $0x30] sm:$0xff]
        %v375 = vld [vmem:[#allocation5 + $0x38] sm:$0xff]
        %v376 = vld [vmem:[#allocation5 + $0x40] sm:$0xff]
        %v377 = vld [vmem:[#allocation5 + $0x48] sm:$0xff]
        %v378 = vld [vmem:[#allocation5 + $0x50] sm:$0xff]
        %v379 = vld [vmem:[#allocation5 + $0x58] sm:$0xff]
        %v380 = vld [vmem:[#allocation5 + $0x60] sm:$0xff]
        %v381 = vld [vmem:[#allocation5 + $0x68] sm:$0xff]
        %v382 = vld [vmem:[#allocation5 + $0x70] sm:$0xff]
        %v383 = vld [vmem:[#allocation5 + $0x78] sm:$0xff]
        %v384 = vld [vmem:[#allocation5 + $0x80] sm:$0xff]
        %v385 = vld [vmem:[#allocation5 + $0x88] sm:$0xff]
        %v386 = vld [vmem:[#allocation5 + $0x90] sm:$0xff]
        %v387 = vld [vmem:[#allocation5 + $0x98] sm:$0xff]
        %v388 = vld [vmem:[#allocation5 + $0xa0] sm:$0xff]
        %v389 = vld [vmem:[#allocation5 + $0xa8] sm:$0xff]
        %v390 = vld [vmem:[#allocation5 + $0xb0] sm:$0xff]
        %v391 = vld [vmem:[#allocation5 + $0xb8] sm:$0xff]
        %v392 = vld [vmem:[#allocation5 + $0xc0] sm:$0xff]
        %v393 = vld [vmem:[#allocation5 + $0xc8] sm:$0xff]
        %v394 = vld [vmem:[#allocation5 + $0xd0] sm:$0xff]
        %v395 = vld [vmem:[#allocation5 + $0xd8] sm:$0xff]
        %v396 = vld [vmem:[#allocation5 + $0xe0] sm:$0xff]
        %v397 = vld [vmem:[#allocation5 + $0xe8] sm:$0xff]
        %v398 = vld [vmem:[#allocation5 + $0xf0] sm:$0xff]
        %v399 = vld [vmem:[#allocation5 + $0xf8] sm:$0xff]
        %v400 = vld [vmem:[%s2] sm:$0x3]
        %v402 = vlaneseq
        %v403 = vshrl.u32 %v402, 7
        %v404 = vsub.s32 0, %v403
        %v405 = vrot.slane %v400, %v404
        %v406 = vlaneseq
        %v407 = vshrl.u32 %v406, 7
        %v408 = vsub.s32 1, %v407
        %v409 = vrot.slane %v400, %v408
        %v444 = vunpack.c.l.b16 %v368
        %v445 = vunpack.c.h.b16 %v368
        %v446 = vunpack.c.l.b16 %v369
        %v447 = vunpack.c.h.b16 %v369
        %v448 = vunpack.c.l.b16 %v370
        %v449 = vunpack.c.h.b16 %v370
        %v450 = vunpack.c.l.b16 %v371
        %v451 = vunpack.c.h.b16 %v371
        %v452 = vunpack.c.l.b16 %v372
        %v453 = vunpack.c.h.b16 %v372
        %v454 = vunpack.c.l.b16 %v373
        %v455 = vunpack.c.h.b16 %v373
        %v456 = vunpack.c.l.b16 %v374
        %v457 = vunpack.c.h.b16 %v374
        %v458 = vunpack.c.l.b16 %v375
        %v459 = vunpack.c.h.b16 %v375
        %v460 = vunpack.c.l.b16 %v376
        %v461 = vunpack.c.h.b16 %v376
        %v462 = vunpack.c.l.b16 %v377
        %v463 = vunpack.c.h.b16 %v377
        %v464 = vunpack.c.l.b16 %v378
        %v465 = vunpack.c.h.b16 %v378
        %v466 = vunpack.c.l.b16 %v379
        %v467 = vunpack.c.h.b16 %v379
        %v468 = vunpack.c.l.b16 %v380
        %v469 = vunpack.c.h.b16 %v380
        %v470 = vunpack.c.l.b16 %v381
        %v471 = vunpack.c.h.b16 %v381
        %v472 = vunpack.c.l.b16 %v382
        %v473 = vunpack.c.h.b16 %v382
        %v474 = vunpack.c.l.b16 %v383
        %v475 = vunpack.c.h.b16 %v383
        %v476 = vunpack.c.l.b16 %v384
        %v477 = vunpack.c.h.b16 %v384
        %v478 = vunpack.c.l.b16 %v385
        %v479 = vunpack.c.h.b16 %v385
        %v480 = vunpack.c.l.b16 %v386
        %v481 = vunpack.c.h.b16 %v386
        %v482 = vunpack.c.l.b16 %v387
        %v483 = vunpack.c.h.b16 %v387
        %v484 = vunpack.c.l.b16 %v388
        %v485 = vunpack.c.h.b16 %v388
        %v486 = vunpack.c.l.b16 %v389
        %v487 = vunpack.c.h.b16 %v389
        %v488 = vunpack.c.l.b16 %v390
        %v489 = vunpack.c.h.b16 %v390
        %v490 = vunpack.c.l.b16 %v391
        %v491 = vunpack.c.h.b16 %v391
        %v492 = vunpack.c.l.b16 %v392
        %v493 = vunpack.c.h.b16 %v392
        %v494 = vunpack.c.l.b16 %v393
        %v495 = vunpack.c.h.b16 %v393
        %v496 = vunpack.c.l.b16 %v394
        %v497 = vunpack.c.h.b16 %v394
        %v498 = vunpack.c.l.b16 %v395
        %v499 = vunpack.c.h.b16 %v395
        %v500 = vunpack.c.l.b16 %v396
        %v501 = vunpack.c.h.b16 %v396
        %v502 = vunpack.c.l.b16 %v397
        %v503 = vunpack.c.h.b16 %v397
        %v504 = vunpack.c.l.b16 %v398
        %v505 = vunpack.c.h.b16 %v398
        %v506 = vunpack.c.l.b16 %v399
        %v507 = vunpack.c.h.b16 %v399
        %v508 = vpack.c.b16 %v446, %v444
        %v509 = vpack.c.b16 %v447, %v445
        %v510 = vpack.c.b16 %v450, %v448
        %v511 = vpack.c.b16 %v451, %v449
        %v512 = vpack.c.b16 %v454, %v452
        %v513 = vpack.c.b16 %v455, %v453
        %v514 = vpack.c.b16 %v458, %v456
        %v515 = vpack.c.b16 %v459, %v457
        %v516 = vpack.c.b16 %v462, %v460
        %v517 = vpack.c.b16 %v463, %v461
        %v518 = vpack.c.b16 %v466, %v464
        %v519 = vpack.c.b16 %v467, %v465
        %v520 = vpack.c.b16 %v470, %v468
        %v521 = vpack.c.b16 %v471, %v469
        %v522 = vpack.c.b16 %v474, %v472
        %v523 = vpack.c.b16 %v475, %v473
        %v524 = vpack.c.b16 %v478, %v476
        %v525 = vpack.c.b16 %v479, %v477
        %v526 = vpack.c.b16 %v482, %v480
        %v527 = vpack.c.b16 %v483, %v481
        %v528 = vpack.c.b16 %v486, %v484
        %v529 = vpack.c.b16 %v487, %v485
        %v530 = vpack.c.b16 %v490, %v488
        %v531 = vpack.c.b16 %v491, %v489
        %v532 = vpack.c.b16 %v494, %v492
        %v533 = vpack.c.b16 %v495, %v493
        %v534 = vpack.c.b16 %v498, %v496
        %v535 = vpack.c.b16 %v499, %v497
        %v536 = vpack.c.b16 %v502, %v500
        %v537 = vpack.c.b16 %v503, %v501
        %v538 = vpack.c.b16 %v506, %v504
        %v539 = vpack.c.b16 %v507, %v505
        %572 = vmatprep.subr.bf16.mxu0 %v509
        %573 = vmatpush1.bf16.msra.mxu0 %v508
        %574 = vmatprep.subr.bf16.mxu0 %v511
        %575 = vmatpush1.bf16.msra.mxu0 %v510
        %576 = vmatprep.subr.bf16.mxu0 %v513
        %577 = vmatpush1.bf16.msra.mxu0 %v512
        %578 = vmatprep.subr.bf16.mxu0 %v515
        %579 = vmatpush1.bf16.msra.mxu0 %v514
        %580 = vmatprep.subr.bf16.mxu0 %v517
        %581 = vmatpush1.bf16.msra.mxu0 %v516
        %582 = vmatprep.subr.bf16.mxu0 %v519
        %583 = vmatpush1.bf16.msra.mxu0 %v518
        %584 = vmatprep.subr.bf16.mxu0 %v521
        %585 = vmatpush1.bf16.msra.mxu0 %v520
        %586 = vmatprep.subr.bf16.mxu0 %v523
        %587 = vmatpush1.bf16.msra.mxu0 %v522
        %588 = vmatprep.subr.bf16.mxu0 %v525
        %589 = vmatpush1.bf16.msra.mxu0 %v524
        %590 = vmatprep.subr.bf16.mxu0 %v527
        %591 = vmatpush1.bf16.msra.mxu0 %v526
        %592 = vmatprep.subr.bf16.mxu0 %v529
        %593 = vmatpush1.bf16.msra.mxu0 %v528
        %594 = vmatprep.subr.bf16.mxu0 %v531
        %595 = vmatpush1.bf16.msra.mxu0 %v530
        %596 = vmatprep.subr.bf16.mxu0 %v533
        %597 = vmatpush1.bf16.msra.mxu0 %v532
        %598 = vmatprep.subr.bf16.mxu0 %v535
        %599 = vmatpush1.bf16.msra.mxu0 %v534
        %600 = vmatprep.subr.bf16.mxu0 %v537
        %601 = vmatpush1.bf16.msra.mxu0 %v536
        %602 = vmatprep.subr.bf16.mxu0 %v539
        %603 = vmatpush1.bf16.msra.mxu0 %v538
        %604 = vmatprep.mubr.bf16.mxu0 %v361
        %605 = vmatmul.mubr.bf16.gmra.mrb[0].mxu0 %v360
        %v606 = vpop.f32.mrb[0].mxu0
        %v607 = vadd.f32 %v405, %v606
        %v608 = vpop.f32.mrb[0].mxu0
        %v609 = vadd.f32 %v409, %v608
        %v610 = vpop.f32.mrb[0].mxu0
        %v611 = vadd.f32 %v405, %v610
        %v612 = vpop.f32.mrb[0].mxu0
        %v613 = vadd.f32 %v409, %v612
        %614 = vmatprep.mubr.bf16.mxu0 %v363
        %615 = vmatmul.mubr.bf16.gmra.mrb[0].mxu0 %v362
        %v616 = vpop.f32.mrb[0].mxu0
        %v617 = vadd.f32 %v405, %v616
        %v618 = vpop.f32.mrb[0].mxu0
        %v619 = vadd.f32 %v409, %v618
        %v620 = vpop.f32.mrb[0].mxu0
        %v621 = vadd.f32 %v405, %v620
        %v622 = vpop.f32.mrb[0].mxu0
        %v623 = vadd.f32 %v409, %v622
        %624 = vmatprep.mubr.bf16.mxu0 %v365
        %625 = vmatmul.mubr.bf16.gmra.mrb[0].mxu0 %v364
        %v626 = vpop.f32.mrb[0].mxu0
        %v627 = vadd.f32 %v405, %v626
        %v628 = vpop.f32.mrb[0].mxu0
        %v629 = vadd.f32 %v409, %v628
        %v630 = vpop.f32.mrb[0].mxu0
        %v631 = vadd.f32 %v405, %v630
        %v632 = vpop.f32.mrb[0].mxu0
        %v633 = vadd.f32 %v409, %v632
        %634 = vmatprep.mubr.bf16.mxu0 %v367
        %635 = vmatmul.mubr.bf16.gmra.mrb[0].mxu0 %v366
        %v636 = vpop.f32.mrb[0].mxu0
        %v637 = vadd.f32 %v405, %v636
        %v638 = vpop.f32.mrb[0].mxu0
        %v639 = vadd.f32 %v409, %v638
        %v640 = vpop.f32.mrb[0].mxu0
        %v641 = vadd.f32 %v405, %v640
        %v642 = vpop.f32.mrb[0].mxu0
        %v643 = vadd.f32 %v409, %v642
        %644 = vdwg.mxu0
        %v645 = vmax.f32 %v607, 0.0
        %v646 = vmax.f32 %v609, 0.0
        %v647 = vmax.f32 %v611, 0.0
        %v648 = vmax.f32 %v613, 0.0
        %v649 = vmax.f32 %v617, 0.0
        %v650 = vmax.f32 %v619, 0.0
        %v651 = vmax.f32 %v621, 0.0
        %v652 = vmax.f32 %v623, 0.0
        %v653 = vmax.f32 %v627, 0.0
        %v654 = vmax.f32 %v629, 0.0
        %v655 = vmax.f32 %v631, 0.0
        %v656 = vmax.f32 %v633, 0.0
        %v657 = vmax.f32 %v637, 0.0
        %v658 = vmax.f32 %v639, 0.0
        %v659 = vmax.f32 %v641, 0.0
        %v660 = vmax.f32 %v643, 0.0
        %v661 = vpack.c.bf16 %v647, %v645
        %v662 = vpack.c.bf16 %v648, %v646
        %v663 = vpack.c.bf16 %v651, %v649
        %v664 = vpack.c.bf16 %v652, %v650
        %v665 = vpack.c.bf16 %v655, %v653
        %v666 = vpack.c.bf16 %v656, %v654
        %v667 = vpack.c.bf16 %v659, %v657
        %v668 = vpack.c.bf16 %v660, %v658
        %v669 = vld [vmem:[#allocation7] sm:$0xff]
        %v670 = vld [vmem:[#allocation7 + $0x8] sm:$0xff]
        %v671 = vld [vmem:[#allocation7 + $0x10] sm:$0xff]
        %v672 = vld [vmem:[#allocation7 + $0x18] sm:$0xff]
        %v673 = vld [vmem:[#allocation7 + $0x20] sm:$0xff]
        %v674 = vld [vmem:[#allocation7 + $0x28] sm:$0xff]
        %v675 = vld [vmem:[#allocation7 + $0x30] sm:$0xff]
        %v676 = vld [vmem:[#allocation7 + $0x38] sm:$0xff]
        %v677 = vld [vmem:[#allocation7 + $0x40] sm:$0xff]
        %v678 = vld [vmem:[#allocation7 + $0x48] sm:$0xff]
        %v679 = vld [vmem:[#allocation7 + $0x50] sm:$0xff]
        %v680 = vld [vmem:[#allocation7 + $0x58] sm:$0xff]
        %v681 = vld [vmem:[#allocation7 + $0x60] sm:$0xff]
        %v682 = vld [vmem:[#allocation7 + $0x68] sm:$0xff]
        %v683 = vld [vmem:[#allocation7 + $0x70] sm:$0xff]
        %v684 = vld [vmem:[#allocation7 + $0x78] sm:$0xff]
        %v685 = vld [vmem:[#allocation7 + $0x80] sm:$0xff]
        %v686 = vld [vmem:[#allocation7 + $0x88] sm:$0xff]
        %v687 = vld [vmem:[#allocation7 + $0x90] sm:$0xff]
        %v688 = vld [vmem:[#allocation7 + $0x98] sm:$0xff]
        %v689 = vld [vmem:[#allocation7 + $0xa0] sm:$0xff]
        %v690 = vld [vmem:[#allocation7 + $0xa8] sm:$0xff]
        %v691 = vld [vmem:[#allocation7 + $0xb0] sm:$0xff]
        %v692 = vld [vmem:[#allocation7 + $0xb8] sm:$0xff]
        %v693 = vld [vmem:[#allocation7 + $0xc0] sm:$0xff]
        %v694 = vld [vmem:[#allocation7 + $0xc8] sm:$0xff]
        %v695 = vld [vmem:[#allocation7 + $0xd0] sm:$0xff]
        %v696 = vld [vmem:[#allocation7 + $0xd8] sm:$0xff]
        %v697 = vld [vmem:[#allocation7 + $0xe0] sm:$0xff]
        %v698 = vld [vmem:[#allocation7 + $0xe8] sm:$0xff]
        %v699 = vld [vmem:[#allocation7 + $0xf0] sm:$0xff]
        %v700 = vld [vmem:[#allocation7 + $0xf8] sm:$0xff]
        %v701 = vld [vmem:[%s4] sm:$0x3]
        %v703 = vlaneseq
        %v704 = vshrl.u32 %v703, 7
        %v705 = vsub.s32 0, %v704
        %v706 = vrot.slane %v701, %v705
        %v707 = vlaneseq
        %v708 = vshrl.u32 %v707, 7
        %v709 = vsub.s32 1, %v708
        %v710 = vrot.slane %v701, %v709
        %v745 = vunpack.c.l.b16 %v669
        %v746 = vunpack.c.h.b16 %v669
        %v747 = vunpack.c.l.b16 %v670
        %v748 = vunpack.c.h.b16 %v670
        %v749 = vunpack.c.l.b16 %v671
        %v750 = vunpack.c.h.b16 %v671
        %v751 = vunpack.c.l.b16 %v672
        %v752 = vunpack.c.h.b16 %v672
        %v753 = vunpack.c.l.b16 %v673
        %v754 = vunpack.c.h.b16 %v673
        %v755 = vunpack.c.l.b16 %v674
        %v756 = vunpack.c.h.b16 %v674
        %v757 = vunpack.c.l.b16 %v675
        %v758 = vunpack.c.h.b16 %v675
        %v759 = vunpack.c.l.b16 %v676
        %v760 = vunpack.c.h.b16 %v676
        %v761 = vunpack.c.l.b16 %v677
        %v762 = vunpack.c.h.b16 %v677
        %v763 = vunpack.c.l.b16 %v678
        %v764 = vunpack.c.h.b16 %v678
        %v765 = vunpack.c.l.b16 %v679
        %v766 = vunpack.c.h.b16 %v679
        %v767 = vunpack.c.l.b16 %v680
        %v768 = vunpack.c.h.b16 %v680
        %v769 = vunpack.c.l.b16 %v681
        %v770 = vunpack.c.h.b16 %v681
        %v771 = vunpack.c.l.b16 %v682
        %v772 = vunpack.c.h.b16 %v682
        %v773 = vunpack.c.l.b16 %v683
        %v774 = vunpack.c.h.b16 %v683
        %v775 = vunpack.c.l.b16 %v684
        %v776 = vunpack.c.h.b16 %v684
        %v777 = vunpack.c.l.b16 %v685
        %v778 = vunpack.c.h.b16 %v685
        %v779 = vunpack.c.l.b16 %v686
        %v780 = vunpack.c.h.b16 %v686
        %v781 = vunpack.c.l.b16 %v687
        %v782 = vunpack.c.h.b16 %v687
        %v783 = vunpack.c.l.b16 %v688
        %v784 = vunpack.c.h.b16 %v688
        %v785 = vunpack.c.l.b16 %v689
        %v786 = vunpack.c.h.b16 %v689
        %v787 = vunpack.c.l.b16 %v690
        %v788 = vunpack.c.h.b16 %v690
        %v789 = vunpack.c.l.b16 %v691
        %v790 = vunpack.c.h.b16 %v691
        %v791 = vunpack.c.l.b16 %v692
        %v792 = vunpack.c.h.b16 %v692
        %v793 = vunpack.c.l.b16 %v693
        %v794 = vunpack.c.h.b16 %v693
        %v795 = vunpack.c.l.b16 %v694
        %v796 = vunpack.c.h.b16 %v694
        %v797 = vunpack.c.l.b16 %v695
        %v798 = vunpack.c.h.b16 %v695
        %v799 = vunpack.c.l.b16 %v696
        %v800 = vunpack.c.h.b16 %v696
        %v801 = vunpack.c.l.b16 %v697
        %v802 = vunpack.c.h.b16 %v697
        %v803 = vunpack.c.l.b16 %v698
        %v804 = vunpack.c.h.b16 %v698
        %v805 = vunpack.c.l.b16 %v699
        %v806 = vunpack.c.h.b16 %v699
        %v807 = vunpack.c.l.b16 %v700
        %v808 = vunpack.c.h.b16 %v700
        %v809 = vpack.c.b16 %v747, %v745
        %v810 = vpack.c.b16 %v748, %v746
        %v811 = vpack.c.b16 %v751, %v749
        %v812 = vpack.c.b16 %v752, %v750
        %v813 = vpack.c.b16 %v755, %v753
        %v814 = vpack.c.b16 %v756, %v754
        %v815 = vpack.c.b16 %v759, %v757
        %v816 = vpack.c.b16 %v760, %v758
        %v817 = vpack.c.b16 %v763, %v761
        %v818 = vpack.c.b16 %v764, %v762
        %v819 = vpack.c.b16 %v767, %v765
        %v820 = vpack.c.b16 %v768, %v766
        %v821 = vpack.c.b16 %v771, %v769
        %v822 = vpack.c.b16 %v772, %v770
        %v823 = vpack.c.b16 %v775, %v773
        %v824 = vpack.c.b16 %v776, %v774
        %v825 = vpack.c.b16 %v779, %v777
        %v826 = vpack.c.b16 %v780, %v778
        %v827 = vpack.c.b16 %v783, %v781
        %v828 = vpack.c.b16 %v784, %v782
        %v829 = vpack.c.b16 %v787, %v785
        %v830 = vpack.c.b16 %v788, %v786
        %v831 = vpack.c.b16 %v791, %v789
        %v832 = vpack.c.b16 %v792, %v790
        %v833 = vpack.c.b16 %v795, %v793
        %v834 = vpack.c.b16 %v796, %v794
        %v835 = vpack.c.b16 %v799, %v797
        %v836 = vpack.c.b16 %v800, %v798
        %v837 = vpack.c.b16 %v803, %v801
        %v838 = vpack.c.b16 %v804, %v802
        %v839 = vpack.c.b16 %v807, %v805
        %v840 = vpack.c.b16 %v808, %v806
        %873 = vmatprep.subr.bf16.mxu0 %v810
        %874 = vmatpush1.bf16.msra.mxu0 %v809
        %875 = vmatprep.subr.bf16.mxu0 %v812
        %876 = vmatpush1.bf16.msra.mxu0 %v811
        %877 = vmatprep.subr.bf16.mxu0 %v814
        %878 = vmatpush1.bf16.msra.mxu0 %v813
        %879 = vmatprep.subr.bf16.mxu0 %v816
        %880 = vmatpush1.bf16.msra.mxu0 %v815
        %881 = vmatprep.subr.bf16.mxu0 %v818
        %882 = vmatpush1.bf16.msra.mxu0 %v817
        %883 = vmatprep.subr.bf16.mxu0 %v820
        %884 = vmatpush1.bf16.msra.mxu0 %v819
        %885 = vmatprep.subr.bf16.mxu0 %v822
        %886 = vmatpush1.bf16.msra.mxu0 %v821
        %887 = vmatprep.subr.bf16.mxu0 %v824
        %888 = vmatpush1.bf16.msra.mxu0 %v823
        %889 = vmatprep.subr.bf16.mxu0 %v826
        %890 = vmatpush1.bf16.msra.mxu0 %v825
        %891 = vmatprep.subr.bf16.mxu0 %v828
        %892 = vmatpush1.bf16.msra.mxu0 %v827
        %893 = vmatprep.subr.bf16.mxu0 %v830
        %894 = vmatpush1.bf16.msra.mxu0 %v829
        %895 = vmatprep.subr.bf16.mxu0 %v832
        %896 = vmatpush1.bf16.msra.mxu0 %v831
        %897 = vmatprep.subr.bf16.mxu0 %v834
        %898 = vmatpush1.bf16.msra.mxu0 %v833
        %899 = vmatprep.subr.bf16.mxu0 %v836
        %900 = vmatpush1.bf16.msra.mxu0 %v835
        %901 = vmatprep.subr.bf16.mxu0 %v838
        %902 = vmatpush1.bf16.msra.mxu0 %v837
        %903 = vmatprep.subr.bf16.mxu0 %v840
        %904 = vmatpush1.bf16.msra.mxu0 %v839
        %905 = vmatprep.mubr.bf16.mxu0 %v662
        %906 = vmatmul.mubr.bf16.gmra.mrb[0].mxu0 %v661
        %v907 = vpop.f32.mrb[0].mxu0
        %v908 = vadd.f32 %v706, %v907
        %v909 = vpop.f32.mrb[0].mxu0
        %v910 = vadd.f32 %v710, %v909
        %v911 = vpop.f32.mrb[0].mxu0
        %v912 = vadd.f32 %v706, %v911
        %v913 = vpop.f32.mrb[0].mxu0
        %v914 = vadd.f32 %v710, %v913
        %915 = vmatprep.mubr.bf16.mxu0 %v664
        %916 = vmatmul.mubr.bf16.gmra.mrb[0].mxu0 %v663
        %v917 = vpop.f32.mrb[0].mxu0
        %v918 = vadd.f32 %v706, %v917
        %v919 = vpop.f32.mrb[0].mxu0
        %v920 = vadd.f32 %v710, %v919
        %v921 = vpop.f32.mrb[0].mxu0
        %v922 = vadd.f32 %v706, %v921
        %v923 = vpop.f32.mrb[0].mxu0
        %v924 = vadd.f32 %v710, %v923
        %925 = vmatprep.mubr.bf16.mxu0 %v666
        %926 = vmatmul.mubr.bf16.gmra.mrb[0].mxu0 %v665
        %v927 = vpop.f32.mrb[0].mxu0
        %v928 = vadd.f32 %v706, %v927
        %v929 = vpop.f32.mrb[0].mxu0
        %v930 = vadd.f32 %v710, %v929
        %v931 = vpop.f32.mrb[0].mxu0
        %v932 = vadd.f32 %v706, %v931
        %v933 = vpop.f32.mrb[0].mxu0
        %v934 = vadd.f32 %v710, %v933
        %935 = vmatprep.mubr.bf16.mxu0 %v668
        %936 = vmatmul.mubr.bf16.gmra.mrb[0].mxu0 %v667
        %v937 = vpop.f32.mrb[0].mxu0
        %v938 = vadd.f32 %v706, %v937
        %v939 = vpop.f32.mrb[0].mxu0
        %v940 = vadd.f32 %v710, %v939
        %v941 = vpop.f32.mrb[0].mxu0
        %v942 = vadd.f32 %v706, %v941
        %v943 = vpop.f32.mrb[0].mxu0
        %v944 = vadd.f32 %v710, %v943
        %945 = vdwg.mxu0
        %v946 = vmax.f32 %v908, 0.0
        %v947 = vmax.f32 %v910, 0.0
        %v948 = vmax.f32 %v912, 0.0
        %v949 = vmax.f32 %v914, 0.0
        %v950 = vmax.f32 %v918, 0.0
        %v951 = vmax.f32 %v920, 0.0
        %v952 = vmax.f32 %v922, 0.0
        %v953 = vmax.f32 %v924, 0.0
        %v954 = vmax.f32 %v928, 0.0
        %v955 = vmax.f32 %v930, 0.0
        %v956 = vmax.f32 %v932, 0.0
        %v957 = vmax.f32 %v934, 0.0
        %v958 = vmax.f32 %v938, 0.0
        %v959 = vmax.f32 %v940, 0.0
        %v960 = vmax.f32 %v942, 0.0
        %v961 = vmax.f32 %v944, 0.0
        %v962 = vpack.c.bf16 %v948, %v946
        %v963 = vpack.c.bf16 %v949, %v947
        %v964 = vpack.c.bf16 %v952, %v950
        %v965 = vpack.c.bf16 %v953, %v951
        %v966 = vpack.c.bf16 %v956, %v954
        %v967 = vpack.c.bf16 %v957, %v955
        %v968 = vpack.c.bf16 %v960, %v958
        %v969 = vpack.c.bf16 %v961, %v959
        %v970 = vld [vmem:[#allocation8] sm:$0xff]
        %v971 = vld [vmem:[#allocation8 + $0x8] sm:$0xff]
        %v972 = vld [vmem:[#allocation8 + $0x10] sm:$0xff]
        %v973 = vld [vmem:[#allocation8 + $0x18] sm:$0xff]
        %v974 = vld [vmem:[#allocation8 + $0x20] sm:$0xff]
        %v975 = vld [vmem:[#allocation8 + $0x28] sm:$0xff]
        %v976 = vld [vmem:[#allocation8 + $0x30] sm:$0xff]
        %v977 = vld [vmem:[#allocation8 + $0x38] sm:$0xff]
        %v978 = vld [vmem:[#allocation8 + $0x40] sm:$0xff]
        %v979 = vld [vmem:[#allocation8 + $0x48] sm:$0xff]
        %v980 = vld [vmem:[#allocation8 + $0x50] sm:$0xff]
        %v981 = vld [vmem:[#allocation8 + $0x58] sm:$0xff]
        %v982 = vld [vmem:[#allocation8 + $0x60] sm:$0xff]
        %v983 = vld [vmem:[#allocation8 + $0x68] sm:$0xff]
        %v984 = vld [vmem:[#allocation8 + $0x70] sm:$0xff]
        %v985 = vld [vmem:[#allocation8 + $0x78] sm:$0xff]
        %v986 = vld [vmem:[#allocation8 + $0x80] sm:$0xff]
        %v987 = vld [vmem:[#allocation8 + $0x88] sm:$0xff]
        %v988 = vld [vmem:[#allocation8 + $0x90] sm:$0xff]
        %v989 = vld [vmem:[#allocation8 + $0x98] sm:$0xff]
        %v990 = vld [vmem:[#allocation8 + $0xa0] sm:$0xff]
        %v991 = vld [vmem:[#allocation8 + $0xa8] sm:$0xff]
        %v992 = vld [vmem:[#allocation8 + $0xb0] sm:$0xff]
        %v993 = vld [vmem:[#allocation8 + $0xb8] sm:$0xff]
        %v994 = vld [vmem:[#allocation8 + $0xc0] sm:$0xff]
        %v995 = vld [vmem:[#allocation8 + $0xc8] sm:$0xff]
        %v996 = vld [vmem:[#allocation8 + $0xd0] sm:$0xff]
        %v997 = vld [vmem:[#allocation8 + $0xd8] sm:$0xff]
        %v998 = vld [vmem:[#allocation8 + $0xe0] sm:$0xff]
        %v999 = vld [vmem:[#allocation8 + $0xe8] sm:$0xff]
        %v1000 = vld [vmem:[#allocation8 + $0xf0] sm:$0xff]
        %v1001 = vld [vmem:[#allocation8 + $0xf8] sm:$0xff]
        %v1002 = vld [vmem:[%s6] sm:$0x3]
        %v1004 = vlaneseq
        %v1005 = vshrl.u32 %v1004, 7
        %v1006 = vsub.s32 0, %v1005
        %v1007 = vrot.slane %v1002, %v1006
        %v1008 = vlaneseq
        %v1009 = vshrl.u32 %v1008, 7
        %v1010 = vsub.s32 1, %v1009
        %v1011 = vrot.slane %v1002, %v1010
        %v1046 = vunpack.c.l.b16 %v970
        %v1047 = vunpack.c.h.b16 %v970
        %v1048 = vunpack.c.l.b16 %v971
        %v1049 = vunpack.c.h.b16 %v971
        %v1050 = vunpack.c.l.b16 %v972
        %v1051 = vunpack.c.h.b16 %v972
        %v1052 = vunpack.c.l.b16 %v973
        %v1053 = vunpack.c.h.b16 %v973
        %v1054 = vunpack.c.l.b16 %v974
        %v1055 = vunpack.c.h.b16 %v974
        %v1056 = vunpack.c.l.b16 %v975
        %v1057 = vunpack.c.h.b16 %v975
        %v1058 = vunpack.c.l.b16 %v976
        %v1059 = vunpack.c.h.b16 %v976
        %v1060 = vunpack.c.l.b16 %v977
        %v1061 = vunpack.c.h.b16 %v977
        %v1062 = vunpack.c.l.b16 %v978
        %v1063 = vunpack.c.h.b16 %v978
        %v1064 = vunpack.c.l.b16 %v979
        %v1065 = vunpack.c.h.b16 %v979
        %v1066 = vunpack.c.l.b16 %v980
        %v1067 = vunpack.c.h.b16 %v980
        %v1068 = vunpack.c.l.b16 %v981
        %v1069 = vunpack.c.h.b16 %v981
        %v1070 = vunpack.c.l.b16 %v982
        %v1071 = vunpack.c.h.b16 %v982
        %v1072 = vunpack.c.l.b16 %v983
        %v1073 = vunpack.c.h.b16 %v983
        %v1074 = vunpack.c.l.b16 %v984
        %v1075 = vunpack.c.h.b16 %v984
        %v1076 = vunpack.c.l.b16 %v985
        %v1077 = vunpack.c.h.b16 %v985
        %v1078 = vunpack.c.l.b16 %v986
        %v1079 = vunpack.c.h.b16 %v986
        %v1080 = vunpack.c.l.b16 %v987
        %v1081 = vunpack.c.h.b16 %v987
        %v1082 = vunpack.c.l.b16 %v988
        %v1083 = vunpack.c.h.b16 %v988
        %v1084 = vunpack.c.l.b16 %v989
        %v1085 = vunpack.c.h.b16 %v989
        %v1086 = vunpack.c.l.b16 %v990
        %v1087 = vunpack.c.h.b16 %v990
        %v1088 = vunpack.c.l.b16 %v991
        %v1089 = vunpack.c.h.b16 %v991
        %v1090 = vunpack.c.l.b16 %v992
        %v1091 = vunpack.c.h.b16 %v992
        %v1092 = vunpack.c.l.b16 %v993
        %v1093 = vunpack.c.h.b16 %v993
        %v1094 = vunpack.c.l.b16 %v994
        %v1095 = vunpack.c.h.b16 %v994
        %v1096 = vunpack.c.l.b16 %v995
        %v1097 = vunpack.c.h.b16 %v995
        %v1098 = vunpack.c.l.b16 %v996
        %v1099 = vunpack.c.h.b16 %v996
        %v1100 = vunpack.c.l.b16 %v997
        %v1101 = vunpack.c.h.b16 %v997
        %v1102 = vunpack.c.l.b16 %v998
        %v1103 = vunpack.c.h.b16 %v998
        %v1104 = vunpack.c.l.b16 %v999
        %v1105 = vunpack.c.h.b16 %v999
        %v1106 = vunpack.c.l.b16 %v1000
        %v1107 = vunpack.c.h.b16 %v1000
        %v1108 = vunpack.c.l.b16 %v1001
        %v1109 = vunpack.c.h.b16 %v1001
        %v1110 = vpack.c.b16 %v1048, %v1046
        %v1111 = vpack.c.b16 %v1049, %v1047
        %v1112 = vpack.c.b16 %v1052, %v1050
        %v1113 = vpack.c.b16 %v1053, %v1051
        %v1114 = vpack.c.b16 %v1056, %v1054
        %v1115 = vpack.c.b16 %v1057, %v1055
        %v1116 = vpack.c.b16 %v1060, %v1058
        %v1117 = vpack.c.b16 %v1061, %v1059
        %v1118 = vpack.c.b16 %v1064, %v1062
        %v1119 = vpack.c.b16 %v1065, %v1063
        %v1120 = vpack.c.b16 %v1068, %v1066
        %v1121 = vpack.c.b16 %v1069, %v1067
        %v1122 = vpack.c.b16 %v1072, %v1070
        %v1123 = vpack.c.b16 %v1073, %v1071
        %v1124 = vpack.c.b16 %v1076, %v1074
        %v1125 = vpack.c.b16 %v1077, %v1075
        %v1126 = vpack.c.b16 %v1080, %v1078
        %v1127 = vpack.c.b16 %v1081, %v1079
        %v1128 = vpack.c.b16 %v1084, %v1082
        %v1129 = vpack.c.b16 %v1085, %v1083
        %v1130 = vpack.c.b16 %v1088, %v1086
        %v1131 = vpack.c.b16 %v1089, %v1087
        %v1132 = vpack.c.b16 %v1092, %v1090
        %v1133 = vpack.c.b16 %v1093, %v1091
        %v1134 = vpack.c.b16 %v1096, %v1094
        %v1135 = vpack.c.b16 %v1097, %v1095
        %v1136 = vpack.c.b16 %v1100, %v1098
        %v1137 = vpack.c.b16 %v1101, %v1099
        %v1138 = vpack.c.b16 %v1104, %v1102
        %v1139 = vpack.c.b16 %v1105, %v1103
        %v1140 = vpack.c.b16 %v1108, %v1106
        %v1141 = vpack.c.b16 %v1109, %v1107
        %1174 = vmatprep.subr.bf16.mxu0 %v1111
        %1175 = vmatpush1.bf16.msra.mxu0 %v1110
        %1176 = vmatprep.subr.bf16.mxu0 %v1113
        %1177 = vmatpush1.bf16.msra.mxu0 %v1112
        %1178 = vmatprep.subr.bf16.mxu0 %v1115
        %1179 = vmatpush1.bf16.msra.mxu0 %v1114
        %1180 = vmatprep.subr.bf16.mxu0 %v1117
        %1181 = vmatpush1.bf16.msra.mxu0 %v1116
        %1182 = vmatprep.subr.bf16.mxu0 %v1119
        %1183 = vmatpush1.bf16.msra.mxu0 %v1118
        %1184 = vmatprep.subr.bf16.mxu0 %v1121
        %1185 = vmatpush1.bf16.msra.mxu0 %v1120
        %1186 = vmatprep.subr.bf16.mxu0 %v1123
        %1187 = vmatpush1.bf16.msra.mxu0 %v1122
        %1188 = vmatprep.subr.bf16.mxu0 %v1125
        %1189 = vmatpush1.bf16.msra.mxu0 %v1124
        %1190 = vmatprep.subr.bf16.mxu0 %v1127
        %1191 = vmatpush1.bf16.msra.mxu0 %v1126
        %1192 = vmatprep.subr.bf16.mxu0 %v1129
        %1193 = vmatpush1.bf16.msra.mxu0 %v1128
        %1194 = vmatprep.subr.bf16.mxu0 %v1131
        %1195 = vmatpush1.bf16.msra.mxu0 %v1130
        %1196 = vmatprep.subr.bf16.mxu0 %v1133
        %1197 = vmatpush1.bf16.msra.mxu0 %v1132
        %1198 = vmatprep.subr.bf16.mxu0 %v1135
        %1199 = vmatpush1.bf16.msra.mxu0 %v1134
        %1200 = vmatprep.subr.bf16.mxu0 %v1137
        %1201 = vmatpush1.bf16.msra.mxu0 %v1136
        %1202 = vmatprep.subr.bf16.mxu0 %v1139
        %1203 = vmatpush1.bf16.msra.mxu0 %v1138
        %1204 = vmatprep.subr.bf16.mxu0 %v1141
        %1205 = vmatpush1.bf16.msra.mxu0 %v1140
        %1206 = vmatprep.mubr.bf16.mxu0 %v963
        %1207 = vmatmul.mubr.bf16.gmra.mrb[0].mxu0 %v962
        %v1208 = vpop.f32.mrb[0].mxu0
        %v1209 = vadd.f32 %v1007, %v1208
        %v1210 = vpop.f32.mrb[0].mxu0
        %v1211 = vadd.f32 %v1011, %v1210
        %v1212 = vpop.f32.mrb[0].mxu0
        %v1213 = vadd.f32 %v1007, %v1212
        %v1214 = vpop.f32.mrb[0].mxu0
        %v1215 = vadd.f32 %v1011, %v1214
        %1216 = vmatprep.mubr.bf16.mxu0 %v965
        %1217 = vmatmul.mubr.bf16.gmra.mrb[0].mxu0 %v964
        %v1218 = vpop.f32.mrb[0].mxu0
        %v1219 = vadd.f32 %v1007, %v1218
        %v1220 = vpop.f32.mrb[0].mxu0
        %v1221 = vadd.f32 %v1011, %v1220
        %v1222 = vpop.f32.mrb[0].mxu0
        %v1223 = vadd.f32 %v1007, %v1222
        %v1224 = vpop.f32.mrb[0].mxu0
        %v1225 = vadd.f32 %v1011, %v1224
        %1226 = vmatprep.mubr.bf16.mxu0 %v967
        %1227 = vmatmul.mubr.bf16.gmra.mrb[0].mxu0 %v966
        %v1228 = vpop.f32.mrb[0].mxu0
        %v1229 = vadd.f32 %v1007, %v1228
        %v1230 = vpop.f32.mrb[0].mxu0
        %v1231 = vadd.f32 %v1011, %v1230
        %v1232 = vpop.f32.mrb[0].mxu0
        %v1233 = vadd.f32 %v1007, %v1232
        %v1234 = vpop.f32.mrb[0].mxu0
        %v1235 = vadd.f32 %v1011, %v1234
        %1236 = vmatprep.mubr.bf16.mxu0 %v969
        %1237 = vmatmul.mubr.bf16.gmra.mrb[0].mxu0 %v968
        %v1238 = vpop.f32.mrb[0].mxu0
        %v1239 = vadd.f32 %v1007, %v1238
        %v1240 = vpop.f32.mrb[0].mxu0
        %v1241 = vadd.f32 %v1011, %v1240
        %v1242 = vpop.f32.mrb[0].mxu0
        %v1243 = vadd.f32 %v1007, %v1242
        %v1244 = vpop.f32.mrb[0].mxu0
        %v1245 = vadd.f32 %v1011, %v1244
        %1246 = vdwg.mxu0
        %1247 = vst [vmem:[%s341] sm:$0xff] %v1209
        %1248 = vst [vmem:[%s341 + $0x8] sm:$0xff] %v1211
        %1249 = vst [vmem:[%s341 + $0x10] sm:$0xff] %v1213
        %1250 = vst [vmem:[%s341 + $0x18] sm:$0xff] %v1215
        %1251 = vst [vmem:[%s341 + $0x20] sm:$0xff] %v1219
        %1252 = vst [vmem:[%s341 + $0x28] sm:$0xff] %v1221
        %1253 = vst [vmem:[%s341 + $0x30] sm:$0xff] %v1223
        %1254 = vst [vmem:[%s341 + $0x38] sm:$0xff] %v1225
        %1255 = vst [vmem:[%s341 + $0x40] sm:$0xff] %v1229
        %1256 = vst [vmem:[%s341 + $0x48] sm:$0xff] %v1231
        %1257 = vst [vmem:[%s341 + $0x50] sm:$0xff] %v1233
        %1258 = vst [vmem:[%s341 + $0x58] sm:$0xff] %v1235
        %1259 = vst [vmem:[%s341 + $0x60] sm:$0xff] %v1239
        %1260 = vst [vmem:[%s341 + $0x68] sm:$0xff] %v1241
        %1261 = vst [vmem:[%s341 + $0x70] sm:$0xff] %v1243
        %1262 = vst [vmem:[%s341 + $0x78] sm:$0xff] %v1245
        %s1263 = sand.u32 %s186, 1
        %s1264 = scalar_lea.sflag [#allocation4], %s1263
        %s1265 = sand.u32 %s186, 1
        %s1266 = smul.addr %s1265, 128
        %s1267 = scalar_lea.vmem [#allocation10], %s1266
        // Predicated region
        $region65: #{mlp_head_forward.1} parent=47 // pred_check
          %p1268 = pneg %p196
        $region66: #{mlp_head_forward.1} parent=47 // pred_check_branch
          %1270 = sbr.rel (%p1268) target = $region68
        $region67: #{mlp_head_forward.1} parent=47 // pred_region
          %s1271 = smul.u32 8, %s26
          %s1273 = ssub.s32 2048, 2048
          %1274 = vsyncadd %s1264, %s1273
          %s1275 = smul.addr %s1271, 2
          %s1276 = smul.addr %s1275, 128
          %s1277 = scalar_lea.hbm %s7, %s1276
          %s1278 = sshll.u32 %s1267, 4
          %s1279 = int_to_ptr.vmem [resolvable:$true] %s1278
          %1284 = dma.vmem_to_hbm [thread:$0]  %s1279, 2048, %s1277, %s1264, 256, 256, 16
        $region68: #{mlp_head_forward.1} parent=47 // pred_fallthru
          _
      $region48: #{mlp_head_forward.1} parent=5 // pred_fallthru
        _
      %p1285 = scmp.le.s32.totalorder 2, %s21
      // Predicated region
      $region69: #{mlp_head_forward.1} parent=5 // pred_check
        %p1286 = pneg %p1285
      $region70: #{mlp_head_forward.1} parent=5 // pred_check_branch
        %1288 = sbr.rel (%p1286) target = $region72
      $region71: #{mlp_head_forward.1} parent=5 // pred_region
        %s1289 = ssub.s32 %s21, 2
        // Predicated region
        $region73: #{mlp_head_forward.1} parent=71 // pred_check
          %p1290 = pneg %p202
        $region74: #{mlp_head_forward.1} parent=71 // pred_check_branch
          %1292 = sbr.rel (%p1290) target = $region76
        $region75: #{mlp_head_forward.1} parent=71 // pred_region
          %s1293 = sand.u32 %s187, 1
          %s1294 = scalar_lea.sflag [#allocation4], %s1293
          %s1295 = sand.u32 %s187, 1
          %s1296 = smul.addr %s1295, 128
          %s1297 = scalar_lea.vmem [#allocation10], %s1296
          %1298 = dma.done %s1294, 2048
        $region76: #{mlp_head_forward.1} parent=71 // pred_fallthru
          _
      $region72: #{mlp_head_forward.1} parent=5 // pred_fallthru
        _
    $region6: #{mlp_head_forward.1} parent=1 // loop_footer
      %s25 = sadd.s32 1, %s21
    $region7: #{mlp_head_forward.1} parent=1 // loop_footer_branch
      %20 = sbr.rel target = $region3
    $region8: #{mlp_head_forward.1} parent=1 // loop_exit
      _
    %1299 = vsyncpa [#allocation3], 1
    %s1300 = scalar_lea.sflag [#allocation3], 1
    %1301 = vsyncpa %s1300, 1
    %1302 = vsyncpa [#allocation6], 1
    %1303 = vsyncpa [#allocation9], 1
    %1304 = vsyncpa [#allocation4], 1
    %s1305 = scalar_lea.sflag [#allocation4], 1
    %1306 = vsyncpa %s1305, 1

</llo_original>
